<compile_context>
chip_gen: v7x
topology: tpu7x:2x2x1
jax: 0.10.0
libtpu: 0.0.40
codegen_flags: <defaults>
</compile_context>

<pallas_src>
import jax
import jax.numpy as jnp
from jax.experimental import pallas as pl
from jax.experimental.pallas import tpu as pltpu


def _round_up(x: int, m: int) -> int:
    return ((x + m - 1) // m) * m


def _make_jitter_crop_kernel(*, hc, wc, nr, ncw, src_r0, src_c0, dst_r0,
                             dst_c0, needs_zero):
    """Builds the kernel body.  All geometry arguments are Python ints (static)."""

    def kernel(off_ref, img_ref, out_ref, scr_ref):
        # off_ref: SMEM int32[2] = [crop row offset inside scratch, lane roll amount]
        # img_ref: VMEM (Nb, C, H, W)        input batch block (NCHW)
        # out_ref: VMEM (HC, Nb, C, WC)      crop slab (crop rows on the leading axis)
        # scr_ref: VMEM (HS, Nb, C, WS_pad)  zero-padded crop-span scratch
        if needs_zero:
            scr_ref[...] = jnp.zeros(scr_ref.shape, scr_ref.dtype)
        if nr > 0 and ncw > 0:
            # Copy the statically known image window into the scratch, one image
            # row at a time: both sides are (Nb, C, ncw) tiles with identical
            # (sublane=C, lane=W) layout, so this is a plain masked load/store.
            for r in range(nr):
                scr_ref[dst_r0 + r, :, :, dst_c0:dst_c0 + ncw] = (
                    img_ref[:, :, src_r0 + r, src_c0:src_c0 + ncw]
                )
        dr = off_ref[0]          # vertical crop offset inside the scratch
        lane_roll = off_ref[1]   # == (WS_pad - horizontal offset) % WS_pad
        # Dynamic slice on the untiled leading (row) axis.
        y = scr_ref[pl.ds(dr, hc)]               # (HC, Nb, C, WS_pad)
        # Bring columns [dc, dc + WC) to the front with a lane rotation, then keep
        # the first WC lanes.  dc + WC <= WS_real <= WS_pad, so nothing wraps.
        z = pltpu.roll(y, lane_roll, axis=3)
        out_ref[...] = z[:, :, :, :wc]

    return kernel


class JitterCrop:
    """Pallas port of the PyTorch JitterCrop module.

    Args:
        crop_box: [top, left, height, width]
        jitter:   [jitter_h, jitter_w]
    """

    def __init__(self, crop_box, jitter=(10, 10)):
        self.crop_box = tuple(int(v) for v in crop_box)
        self.jitter = tuple(int(v) for v in jitter)

    def __call__(self, img, key):
        top, left, hc, wc = self.crop_box
        jh, jw = self.jitter
        n, c, h, w = img.shape
        dtype = img.dtype
        itemsize = jnp.dtype(dtype).itemsize

        kv, kh2 = jax.random.split(key)
        # random.randint(a, b) is inclusive of both ends.
        vert = jax.random.randint(kv, (), -jh, jh + 1, dtype=jnp.int32)
        horiz = jax.random.randint(kh2, (), -jw, jw + 1, dtype=jnp.int32)
        top_eff = top + vert
        left_eff = left + horiz

        # ---- static geometry: span of source pixels the crop can ever touch ----
        r_lo, c_lo = top - jh, left - jw
        hs = hc + 2 * jh                       # scratch rows (crop span height)
        ws_real = wc + 2 * jw                  # crop span width actually used
        ws_pad = max(_round_up(ws_real, 128), 128)   # lane-aligned scratch width

        # static region of the image intersecting the span (copied into scratch)
        src_r0, src_r1 = max(r_lo, 0), min(r_lo + hs, h)
        src_c0, src_c1 = max(c_lo, 0), min(c_lo + ws_real, w)
        nr, ncw = max(src_r1 - src_r0, 0), max(src_c1 - src_c0, 0)
        dst_r0, dst_c0 = src_r0 - r_lo, src_c0 - c_lo
        covered = (dst_r0 == 0 and nr == hs and dst_c0 == 0 and ncw == ws_real)

        # dynamic position of the crop window inside the scratch
        dr = vert + jh                         # in [0, 2*jh]
        dc = horiz + jw                        # in [0, 2*jw]
        lane_roll = (ws_pad - dc) % ws_pad
        scalars = jnp.stack([dr, lane_roll]).astype(jnp.int32)

        # ---- batch blocking: several images per grid step (amortize per-step cost)
        bytes_per_image = c * h * w * itemsize
        nb = max(1, min(n, (4 * 1024 * 1024) // max(bytes_per_image, 1)))
        while n % nb:
            nb -= 1

        kernel = _make_jitter_crop_kernel(
            hc=hc, wc=wc, nr=nr, ncw=ncw, src_r0=src_r0, src_c0=src_c0,
            dst_r0=dst_r0, dst_c0=dst_c0, needs_zero=not covered)

        grid_spec = pltpu.PrefetchScalarGridSpec(
            num_scalar_prefetch=1,
            grid=(n // nb,),
            # TODO(synk): DMA only the clamped crop-row window (pl.Element dims on H)
            #             instead of the full image block to cut HBM overread.
            in_specs=[pl.BlockSpec((nb, c, h, w), lambda b, off: (b, 0, 0, 0))],
            out_specs=pl.BlockSpec((hc, nb, c, wc), lambda b, off: (0, b, 0, 0)),
            scratch_shapes=[pltpu.VMEM((hs, nb, c, ws_pad), dtype)],
        )
        slab = pl.pallas_call(
            kernel,
            grid_spec=grid_spec,
            out_shape=jax.ShapeDtypeStruct((hc, n, c, wc), dtype),
            compiler_params=pltpu.CompilerParams(
                dimension_semantics=("parallel",)),
            cost_estimate=pl.CostEstimate(
                flops=0, transcendentals=0,
                bytes_accessed=int((n * c * h * w + n * c * hc * wc) * itemsize)),
        )(scalars, img)

        out = jnp.transpose(slab, (1, 2, 0, 3))      # (N, C, HC, WC)
        offsets = jnp.stack([top_eff, left_eff]).astype(jnp.int32)
        return out, offsets


def _reference_crop(img, top_eff, left_eff, hc, wc):
    """Pure-JAX reference of torchvision crop (zero-pads outside the image)."""
    n, c, h, w = img.shape
    rows = top_eff + jnp.arange(hc)
    cols = left_eff + jnp.arange(wc)
    valid = ((rows >= 0) & (rows < h))[:, None] & ((cols >= 0) & (cols < w))[None, :]
    g = img[:, :, jnp.clip(rows, 0, h - 1), :][:, :, :, jnp.clip(cols, 0, w - 1)]
    return jnp.where(valid[None, None], g, jnp.zeros_like(g))


if __name__ == "__main__":
    root = jax.random.PRNGKey(0)
    k_img, *jitter_keys = jax.random.split(root, 6)

    N, C, H, W = 2, 4, 16, 16
    img = jax.random.normal(k_img, (N, C, H, W), dtype=jnp.float32)

    configs = [
        # (crop_box [top, left, h, w], jitter [H, W])
        ([3, 2, 8, 8], [4, 4]),   # can jitter past the image edge -> zero-pad path
        ([4, 4, 8, 8], [2, 2]),   # always stays inside -> skips the zero-init
    ]
    for crop_box, jitter in configs:
        mod = JitterCrop(crop_box=crop_box, jitter=jitter)
        fwd = jax.jit(lambda im, k, m=mod: m(im, k))
        hc, wc = crop_box[2], crop_box[3]
        for k in jitter_keys:
            out, offsets = fwd(img, k)
            out = jax.block_until_ready(out)
            ref = _reference_crop(img, offsets[0], offsets[1], hc, wc)
            assert out.shape == (N, C, hc, wc)
            assert jnp.allclose(out, ref, atol=1e-6, rtol=0.0), (
                f"mismatch vs reference for crop_box={crop_box}, jitter={jitter}")

    print("KERNEL_OK")
</pallas_src>

<mosaic_0001>
module attributes {stable_mosaic.version = 11 : i64} {
  func.func @kernel(%arg0: i32, %arg1: memref<2xi32, #tpu.memory_space<smem>>, %arg2: memref<2x4x16x16xf32, #tpu.memory_space<vmem>>, %arg3: memref<8x2x4x8xf32, #tpu.memory_space<vmem>>, %arg4: memref<16x2x4x128xf32, #tpu.memory_space<vmem>>) attributes {dimension_semantics = [#tpu.dimension_semantics<parallel>], iteration_bounds = array<i64: 1>, scalar_prefetch = 1 : i64, scratch_operands = 1 : i64, tpu.core_type = #tpu.core_type<tc>, window_params = [{transform_indices = @transform_0, window_bounds = array<i64: 2, 4, 16, 16>}, {transform_indices = @transform_1, window_bounds = array<i64: 8, 2, 4, 8>}]} {
    %cst = arith.constant 0.000000e+00 : f32
    %0 = vector.broadcast %cst : f32 to vector<16x2x4x128xf32>
    %c0 = arith.constant 0 : index
    %c0_0 = arith.constant 0 : index
    %c0_1 = arith.constant 0 : index
    %c0_2 = arith.constant 0 : index
    %1 = vector.load %arg4[%c0, %c0_0, %c0_1, %c0_2] : memref<16x2x4x128xf32, #tpu.memory_space<vmem>>, vector<16x2x4x128xf32>
    tpu.vector_store %arg4[%c0, %c0_0, %c0_1, %c0_2], %0 {strides = array<i32>} : memref<16x2x4x128xf32, #tpu.memory_space<vmem>>, vector<16x2x4x128xf32>,
    %c0_3 = arith.constant 0 : index
    %c0_4 = arith.constant 0 : index
    %c0_5 = arith.constant 0 : index
    %c0_6 = arith.constant 0 : index
    %2 = vector.load %arg2[%c0_3, %c0_4, %c0_5, %c0_6] : memref<2x4x16x16xf32, #tpu.memory_space<vmem>>, vector<2x4x1x14xf32>
    %3 = vector.shape_cast %2 : vector<2x4x1x14xf32> to vector<2x4x14xf32>
    %c1 = arith.constant 1 : index
    %c0_7 = arith.constant 0 : index
    %c0_8 = arith.constant 0 : index
    %c2 = arith.constant 2 : index
    %4 = vector.load %arg4[%c1, %c0_7, %c0_8, %c2] : memref<16x2x4x128xf32, #tpu.memory_space<vmem>>, vector<1x2x4x14xf32>
    %5 = vector.shape_cast %4 : vector<1x2x4x14xf32> to vector<2x4x14xf32>
    %6 = vector.shape_cast %3 : vector<2x4x14xf32> to vector<1x2x4x14xf32>
    tpu.vector_store %arg4[%c1, %c0_7, %c0_8, %c2], %6 {strides = array<i32>} : memref<16x2x4x128xf32, #tpu.memory_space<vmem>>, vector<1x2x4x14xf32>,
    %c0_9 = arith.constant 0 : index
    %c0_10 = arith.constant 0 : index
    %c1_11 = arith.constant 1 : index
    %c0_12 = arith.constant 0 : index
    %7 = vector.load %arg2[%c0_9, %c0_10, %c1_11, %c0_12] : memref<2x4x16x16xf32, #tpu.memory_space<vmem>>, vector<2x4x1x14xf32>
    %8 = vector.shape_cast %7 : vector<2x4x1x14xf32> to vector<2x4x14xf32>
    %c2_13 = arith.constant 2 : index
    %c0_14 = arith.constant 0 : index
    %c0_15 = arith.constant 0 : index
    %c2_16 = arith.constant 2 : index
    %9 = vector.load %arg4[%c2_13, %c0_14, %c0_15, %c2_16] : memref<16x2x4x128xf32, #tpu.memory_space<vmem>>, vector<1x2x4x14xf32>
    %10 = vector.shape_cast %9 : vector<1x2x4x14xf32> to vector<2x4x14xf32>
    %11 = vector.shape_cast %8 : vector<2x4x14xf32> to vector<1x2x4x14xf32>
    tpu.vector_store %arg4[%c2_13, %c0_14, %c0_15, %c2_16], %11 {strides = array<i32>} : memref<16x2x4x128xf32, #tpu.memory_space<vmem>>, vector<1x2x4x14xf32>,
    %c0_17 = arith.constant 0 : index
    %c0_18 = arith.constant 0 : index
    %c2_19 = arith.constant 2 : index
    %c0_20 = arith.constant 0 : index
    %12 = vector.load %arg2[%c0_17, %c0_18, %c2_19, %c0_20] : memref<2x4x16x16xf32, #tpu.memory_space<vmem>>, vector<2x4x1x14xf32>
    %13 = vector.shape_cast %12 : vector<2x4x1x14xf32> to vector<2x4x14xf32>
    %c3 = arith.constant 3 : index
    %c0_21 = arith.constant 0 : index
    %c0_22 = arith.constant 0 : index
    %c2_23 = arith.constant 2 : index
    %14 = vector.load %arg4[%c3, %c0_21, %c0_22, %c2_23] : memref<16x2x4x128xf32, #tpu.memory_space<vmem>>, vector<1x2x4x14xf32>
    %15 = vector.shape_cast %14 : vector<1x2x4x14xf32> to vector<2x4x14xf32>
    %16 = vector.shape_cast %13 : vector<2x4x14xf32> to vector<1x2x4x14xf32>
    tpu.vector_store %arg4[%c3, %c0_21, %c0_22, %c2_23], %16 {strides = array<i32>} : memref<16x2x4x128xf32, #tpu.memory_space<vmem>>, vector<1x2x4x14xf32>,
    %c0_24 = arith.constant 0 : index
    %c0_25 = arith.constant 0 : index
    %c3_26 = arith.constant 3 : index
    %c0_27 = arith.constant 0 : index
    %17 = vector.load %arg2[%c0_24, %c0_25, %c3_26, %c0_27] : memref<2x4x16x16xf32, #tpu.memory_space<vmem>>, vector<2x4x1x14xf32>
    %18 = vector.shape_cast %17 : vector<2x4x1x14xf32> to vector<2x4x14xf32>
    %c4 = arith.constant 4 : index
    %c0_28 = arith.constant 0 : index
    %c0_29 = arith.constant 0 : index
    %c2_30 = arith.constant 2 : index
    %19 = vector.load %arg4[%c4, %c0_28, %c0_29, %c2_30] : memref<16x2x4x128xf32, #tpu.memory_space<vmem>>, vector<1x2x4x14xf32>
    %20 = vector.shape_cast %19 : vector<1x2x4x14xf32> to vector<2x4x14xf32>
    %21 = vector.shape_cast %18 : vector<2x4x14xf32> to vector<1x2x4x14xf32>
    tpu.vector_store %arg4[%c4, %c0_28, %c0_29, %c2_30], %21 {strides = array<i32>} : memref<16x2x4x128xf32, #tpu.memory_space<vmem>>, vector<1x2x4x14xf32>,
    %c0_31 = arith.constant 0 : index
    %c0_32 = arith.constant 0 : index
    %c4_33 = arith.constant 4 : index
    %c0_34 = arith.constant 0 : index
    %22 = vector.load %arg2[%c0_31, %c0_32, %c4_33, %c0_34] : memref<2x4x16x16xf32, #tpu.memory_space<vmem>>, vector<2x4x1x14xf32>
    %23 = vector.shape_cast %22 : vector<2x4x1x14xf32> to vector<2x4x14xf32>
    %c5 = arith.constant 5 : index
    %c0_35 = arith.constant 0 : index
    %c0_36 = arith.constant 0 : index
    %c2_37 = arith.constant 2 : index
    %24 = vector.load %arg4[%c5, %c0_35, %c0_36, %c2_37] : memref<16x2x4x128xf32, #tpu.memory_space<vmem>>, vector<1x2x4x14xf32>
    %25 = vector.shape_cast %24 : vector<1x2x4x14xf32> to vector<2x4x14xf32>
    %26 = vector.shape_cast %23 : vector<2x4x14xf32> to vector<1x2x4x14xf32>
    tpu.vector_store %arg4[%c5, %c0_35, %c0_36, %c2_37], %26 {strides = array<i32>} : memref<16x2x4x128xf32, #tpu.memory_space<vmem>>, vector<1x2x4x14xf32>,
    %c0_38 = arith.constant 0 : index
    %c0_39 = arith.constant 0 : index
    %c5_40 = arith.constant 5 : index
    %c0_41 = arith.constant 0 : index
    %27 = vector.load %arg2[%c0_38, %c0_39, %c5_40, %c0_41] : memref<2x4x16x16xf32, #tpu.memory_space<vmem>>, vector<2x4x1x14xf32>
    %28 = vector.shape_cast %27 : vector<2x4x1x14xf32> to vector<2x4x14xf32>
    %c6 = arith.constant 6 : index
    %c0_42 = arith.constant 0 : index
    %c0_43 = arith.constant 0 : index
    %c2_44 = arith.constant 2 : index
    %29 = vector.load %arg4[%c6, %c0_42, %c0_43, %c2_44] : memref<16x2x4x128xf32, #tpu.memory_space<vmem>>, vector<1x2x4x14xf32>
    %30 = vector.shape_cast %29 : vector<1x2x4x14xf32> to vector<2x4x14xf32>
    %31 = vector.shape_cast %28 : vector<2x4x14xf32> to vector<1x2x4x14xf32>
    tpu.vector_store %arg4[%c6, %c0_42, %c0_43, %c2_44], %31 {strides = array<i32>} : memref<16x2x4x128xf32, #tpu.memory_space<vmem>>, vector<1x2x4x14xf32>,
    %c0_45 = arith.constant 0 : index
    %c0_46 = arith.constant 0 : index
    %c6_47 = arith.constant 6 : index
    %c0_48 = arith.constant 0 : index
    %32 = vector.load %arg2[%c0_45, %c0_46, %c6_47, %c0_48] : memref<2x4x16x16xf32, #tpu.memory_space<vmem>>, vector<2x4x1x14xf32>
    %33 = vector.shape_cast %32 : vector<2x4x1x14xf32> to vector<2x4x14xf32>
    %c7 = arith.constant 7 : index
    %c0_49 = arith.constant 0 : index
    %c0_50 = arith.constant 0 : index
    %c2_51 = arith.constant 2 : index
    %34 = vector.load %arg4[%c7, %c0_49, %c0_50, %c2_51] : memref<16x2x4x128xf32, #tpu.memory_space<vmem>>, vector<1x2x4x14xf32>
    %35 = vector.shape_cast %34 : vector<1x2x4x14xf32> to vector<2x4x14xf32>
    %36 = vector.shape_cast %33 : vector<2x4x14xf32> to vector<1x2x4x14xf32>
    tpu.vector_store %arg4[%c7, %c0_49, %c0_50, %c2_51], %36 {strides = array<i32>} : memref<16x2x4x128xf32, #tpu.memory_space<vmem>>, vector<1x2x4x14xf32>,
    %c0_52 = arith.constant 0 : index
    %c0_53 = arith.constant 0 : index
    %c7_54 = arith.constant 7 : index
    %c0_55 = arith.constant 0 : index
    %37 = vector.load %arg2[%c0_52, %c0_53, %c7_54, %c0_55] : memref<2x4x16x16xf32, #tpu.memory_space<vmem>>, vector<2x4x1x14xf32>
    %38 = vector.shape_cast %37 : vector<2x4x1x14xf32> to vector<2x4x14xf32>
    %c8 = arith.constant 8 : index
    %c0_56 = arith.constant 0 : index
    %c0_57 = arith.constant 0 : index
    %c2_58 = arith.constant 2 : index
    %39 = vector.load %arg4[%c8, %c0_56, %c0_57, %c2_58] : memref<16x2x4x128xf32, #tpu.memory_space<vmem>>, vector<1x2x4x14xf32>
    %40 = vector.shape_cast %39 : vector<1x2x4x14xf32> to vector<2x4x14xf32>
    %41 = vector.shape_cast %38 : vector<2x4x14xf32> to vector<1x2x4x14xf32>
    tpu.vector_store %arg4[%c8, %c0_56, %c0_57, %c2_58], %41 {strides = array<i32>} : memref<16x2x4x128xf32, #tpu.memory_space<vmem>>, vector<1x2x4x14xf32>,
    %c0_59 = arith.constant 0 : index
    %c0_60 = arith.constant 0 : index
    %c8_61 = arith.constant 8 : index
    %c0_62 = arith.constant 0 : index
    %42 = vector.load %arg2[%c0_59, %c0_60, %c8_61, %c0_62] : memref<2x4x16x16xf32, #tpu.memory_space<vmem>>, vector<2x4x1x14xf32>
    %43 = vector.shape_cast %42 : vector<2x4x1x14xf32> to vector<2x4x14xf32>
    %c9 = arith.constant 9 : index
    %c0_63 = arith.constant 0 : index
    %c0_64 = arith.constant 0 : index
    %c2_65 = arith.constant 2 : index
    %44 = vector.load %arg4[%c9, %c0_63, %c0_64, %c2_65] : memref<16x2x4x128xf32, #tpu.memory_space<vmem>>, vector<1x2x4x14xf32>
    %45 = vector.shape_cast %44 : vector<1x2x4x14xf32> to vector<2x4x14xf32>
    %46 = vector.shape_cast %43 : vector<2x4x14xf32> to vector<1x2x4x14xf32>
    tpu.vector_store %arg4[%c9, %c0_63, %c0_64, %c2_65], %46 {strides = array<i32>} : memref<16x2x4x128xf32, #tpu.memory_space<vmem>>, vector<1x2x4x14xf32>,
    %c0_66 = arith.constant 0 : index
    %c0_67 = arith.constant 0 : index
    %c9_68 = arith.constant 9 : index
    %c0_69 = arith.constant 0 : index
    %47 = vector.load %arg2[%c0_66, %c0_67, %c9_68, %c0_69] : memref<2x4x16x16xf32, #tpu.memory_space<vmem>>, vector<2x4x1x14xf32>
    %48 = vector.shape_cast %47 : vector<2x4x1x14xf32> to vector<2x4x14xf32>
    %c10 = arith.constant 10 : index
    %c0_70 = arith.constant 0 : index
    %c0_71 = arith.constant 0 : index
    %c2_72 = arith.constant 2 : index
    %49 = vector.load %arg4[%c10, %c0_70, %c0_71, %c2_72] : memref<16x2x4x128xf32, #tpu.memory_space<vmem>>, vector<1x2x4x14xf32>
    %50 = vector.shape_cast %49 : vector<1x2x4x14xf32> to vector<2x4x14xf32>
    %51 = vector.shape_cast %48 : vector<2x4x14xf32> to vector<1x2x4x14xf32>
    tpu.vector_store %arg4[%c10, %c0_70, %c0_71, %c2_72], %51 {strides = array<i32>} : memref<16x2x4x128xf32, #tpu.memory_space<vmem>>, vector<1x2x4x14xf32>,
    %c0_73 = arith.constant 0 : index
    %c0_74 = arith.constant 0 : index
    %c10_75 = arith.constant 10 : index
    %c0_76 = arith.constant 0 : index
    %52 = vector.load %arg2[%c0_73, %c0_74, %c10_75, %c0_76] : memref<2x4x16x16xf32, #tpu.memory_space<vmem>>, vector<2x4x1x14xf32>
    %53 = vector.shape_cast %52 : vector<2x4x1x14xf32> to vector<2x4x14xf32>
    %c11 = arith.constant 11 : index
    %c0_77 = arith.constant 0 : index
    %c0_78 = arith.constant 0 : index
    %c2_79 = arith.constant 2 : index
    %54 = vector.load %arg4[%c11, %c0_77, %c0_78, %c2_79] : memref<16x2x4x128xf32, #tpu.memory_space<vmem>>, vector<1x2x4x14xf32>
    %55 = vector.shape_cast %54 : vector<1x2x4x14xf32> to vector<2x4x14xf32>
    %56 = vector.shape_cast %53 : vector<2x4x14xf32> to vector<1x2x4x14xf32>
    tpu.vector_store %arg4[%c11, %c0_77, %c0_78, %c2_79], %56 {strides = array<i32>} : memref<16x2x4x128xf32, #tpu.memory_space<vmem>>, vector<1x2x4x14xf32>,
    %c0_80 = arith.constant 0 : index
    %c0_81 = arith.constant 0 : index
    %c11_82 = arith.constant 11 : index
    %c0_83 = arith.constant 0 : index
    %57 = vector.load %arg2[%c0_80, %c0_81, %c11_82, %c0_83] : memref<2x4x16x16xf32, #tpu.memory_space<vmem>>, vector<2x4x1x14xf32>
    %58 = vector.shape_cast %57 : vector<2x4x1x14xf32> to vector<2x4x14xf32>
    %c12 = arith.constant 12 : index
    %c0_84 = arith.constant 0 : index
    %c0_85 = arith.constant 0 : index
    %c2_86 = arith.constant 2 : index
    %59 = vector.load %arg4[%c12, %c0_84, %c0_85, %c2_86] : memref<16x2x4x128xf32, #tpu.memory_space<vmem>>, vector<1x2x4x14xf32>
    %60 = vector.shape_cast %59 : vector<1x2x4x14xf32> to vector<2x4x14xf32>
    %61 = vector.shape_cast %58 : vector<2x4x14xf32> to vector<1x2x4x14xf32>
    tpu.vector_store %arg4[%c12, %c0_84, %c0_85, %c2_86], %61 {strides = array<i32>} : memref<16x2x4x128xf32, #tpu.memory_space<vmem>>, vector<1x2x4x14xf32>,
    %c0_87 = arith.constant 0 : index
    %c0_88 = arith.constant 0 : index
    %c12_89 = arith.constant 12 : index
    %c0_90 = arith.constant 0 : index
    %62 = vector.load %arg2[%c0_87, %c0_88, %c12_89, %c0_90] : memref<2x4x16x16xf32, #tpu.memory_space<vmem>>, vector<2x4x1x14xf32>
    %63 = vector.shape_cast %62 : vector<2x4x1x14xf32> to vector<2x4x14xf32>
    %c13 = arith.constant 13 : index
    %c0_91 = arith.constant 0 : index
    %c0_92 = arith.constant 0 : index
    %c2_93 = arith.constant 2 : index
    %64 = vector.load %arg4[%c13, %c0_91, %c0_92, %c2_93] : memref<16x2x4x128xf32, #tpu.memory_space<vmem>>, vector<1x2x4x14xf32>
    %65 = vector.shape_cast %64 : vector<1x2x4x14xf32> to vector<2x4x14xf32>
    %66 = vector.shape_cast %63 : vector<2x4x14xf32> to vector<1x2x4x14xf32>
    tpu.vector_store %arg4[%c13, %c0_91, %c0_92, %c2_93], %66 {strides = array<i32>} : memref<16x2x4x128xf32, #tpu.memory_space<vmem>>, vector<1x2x4x14xf32>,
    %c0_94 = arith.constant 0 : index
    %c0_95 = arith.constant 0 : index
    %c13_96 = arith.constant 13 : index
    %c0_97 = arith.constant 0 : index
    %67 = vector.load %arg2[%c0_94, %c0_95, %c13_96, %c0_97] : memref<2x4x16x16xf32, #tpu.memory_space<vmem>>, vector<2x4x1x14xf32>
    %68 = vector.shape_cast %67 : vector<2x4x1x14xf32> to vector<2x4x14xf32>
    %c14 = arith.constant 14 : index
    %c0_98 = arith.constant 0 : index
    %c0_99 = arith.constant 0 : index
    %c2_100 = arith.constant 2 : index
    %69 = vector.load %arg4[%c14, %c0_98, %c0_99, %c2_100] : memref<16x2x4x128xf32, #tpu.memory_space<vmem>>, vector<1x2x4x14xf32>
    %70 = vector.shape_cast %69 : vector<1x2x4x14xf32> to vector<2x4x14xf32>
    %71 = vector.shape_cast %68 : vector<2x4x14xf32> to vector<1x2x4x14xf32>
    tpu.vector_store %arg4[%c14, %c0_98, %c0_99, %c2_100], %71 {strides = array<i32>} : memref<16x2x4x128xf32, #tpu.memory_space<vmem>>, vector<1x2x4x14xf32>,
    %c0_101 = arith.constant 0 : index
    %c0_102 = arith.constant 0 : index
    %c14_103 = arith.constant 14 : index
    %c0_104 = arith.constant 0 : index
    %72 = vector.load %arg2[%c0_101, %c0_102, %c14_103, %c0_104] : memref<2x4x16x16xf32, #tpu.memory_space<vmem>>, vector<2x4x1x14xf32>
    %73 = vector.shape_cast %72 : vector<2x4x1x14xf32> to vector<2x4x14xf32>
    %c15 = arith.constant 15 : index
    %c0_105 = arith.constant 0 : index
    %c0_106 = arith.constant 0 : index
    %c2_107 = arith.constant 2 : index
    %74 = vector.load %arg4[%c15, %c0_105, %c0_106, %c2_107] : memref<16x2x4x128xf32, #tpu.memory_space<vmem>>, vector<1x2x4x14xf32>
    %75 = vector.shape_cast %74 : vector<1x2x4x14xf32> to vector<2x4x14xf32>
    %76 = vector.shape_cast %73 : vector<2x4x14xf32> to vector<1x2x4x14xf32>
    tpu.vector_store %arg4[%c15, %c0_105, %c0_106, %c2_107], %76 {strides = array<i32>} : memref<16x2x4x128xf32, #tpu.memory_space<vmem>>, vector<1x2x4x14xf32>,
    %c0_108 = arith.constant 0 : index
    %77 = memref.load %arg1[%c0_108] : memref<2xi32, #tpu.memory_space<smem>>
    %c1_109 = arith.constant 1 : index
    %78 = memref.load %arg1[%c1_109] : memref<2xi32, #tpu.memory_space<smem>>
    %79 = arith.index_cast %77 : i32 to index
    %c0_110 = arith.constant 0 : index
    %c0_111 = arith.constant 0 : index
    %c0_112 = arith.constant 0 : index
    %80 = vector.load %arg4[%79, %c0_110, %c0_111, %c0_112] : memref<16x2x4x128xf32, #tpu.memory_space<vmem>>, vector<8x2x4x128xf32>
    %81 = tpu.dynamic_rotate %80 by %78 dim 3 : vector<8x2x4x128xf32>, i32 -> vector<8x2x4x128xf32>
    %82 = vector.extract_strided_slice %81 {offsets = [0, 0, 0, 0], sizes = [8, 2, 4, 8], strides = [1, 1, 1, 1]} : vector<8x2x4x128xf32> to vector<8x2x4x8xf32>
    %c0_113 = arith.constant 0 : index
    %c0_114 = arith.constant 0 : index
    %c0_115 = arith.constant 0 : index
    %c0_116 = arith.constant 0 : index
    %83 = vector.load %arg3[%c0_113, %c0_114, %c0_115, %c0_116] : memref<8x2x4x8xf32, #tpu.memory_space<vmem>>, vector<8x2x4x8xf32>
    tpu.vector_store %arg3[%c0_113, %c0_114, %c0_115, %c0_116], %82 {strides = array<i32>} : memref<8x2x4x8xf32, #tpu.memory_space<vmem>>, vector<8x2x4x8xf32>,
    return
  }
  func.func @transform_0(%arg0: i32, %arg1: memref<2xi32, #tpu.memory_space<smem>>) -> (i32, i32, i32, i32) {
    %c0_i32 = arith.constant 0 : i32
    %c0_i32_0 = arith.constant 0 : i32
    %c0_i32_1 = arith.constant 0 : i32
    %c0_i32_2 = arith.constant 0 : i32
    return %arg0, %c0_i32, %c0_i32_0, %c0_i32_1 : i32, i32, i32, i32
  }
  func.func @transform_1(%arg0: i32, %arg1: memref<2xi32, #tpu.memory_space<smem>>) -> (i32, i32, i32, i32) {
    %c0_i32 = arith.constant 0 : i32
    %c0_i32_0 = arith.constant 0 : i32
    %c0_i32_1 = arith.constant 0 : i32
    %c0_i32_2 = arith.constant 0 : i32
    return %c0_i32, %arg0, %c0_i32_0, %c0_i32_1 : i32, i32, i32, i32
  }
}

</mosaic_0001>

<llo_original>
// kernel: _lambda_.1
$region0: #{_lambda_.1}
  #allocation0 [shape = 'u32[]', space=smem, size = 0x4, offset = 0x4, fixed_abs, tag = 'smem constant byte address 0x4 - core index']
  #allocation1 [shape = 'u32[144,128]{1,0:T(1,128)}', space=vmem, size = 0x12000, scoped, tag = 'internal scratch']
  #allocation2 [shape = 'f32[16,2,4,128]{3,2,1,0:T(4,128)}', space=vmem, size = 0x10000, scoped, tag = 'scratch operand']
  #allocation3 [shape = 's32[1]{0}', space=sflag, size = 0x4, scoped, tag = 'scoped memory for _lambda_.1']
  #allocation4 [shape = 'u8[512]{0}', space=smem, size = 0x200, scoped, tag = 'prefetched SMEM operand 0']
  %s0 = inlined_call_operand.vmem [shape: s32[2], index: 0, kind: input, shape index: {}]
  %s1 = inlined_call_operand.vmem [shape: f32[2,4,16,16], index: 1, kind: input, shape index: {}]
  %s2 = inlined_call_operand.vmem [shape: f32[8,2,4,8], index: 2, kind: output, shape index: {}]
  %s3 = sld [smem:[#allocation0]]
  $region14: #{_lambda_.1} parent=0
    _
  %s5 = ssub.s32 1, %s3
  %s6 = scalar_select 0, %s5, %s3
  %s7 = sshll.u32 %s0, 4
  %s8 = int_to_ptr.vmem [resolvable:$true] %s7
  %10 = dma.vmem_to_smem %s8, 16, [#allocation4], [#allocation3]
  %11 = dma.done [#allocation3], 16
  %12 = sfence
  // Predicated region
  $region2: #{_lambda_.1} parent=0 // pred_check
    _
  $region3: #{_lambda_.1} parent=0 // pred_check_branch
    %14 = sbr.rel (0) target = $region5
  $region4: #{_lambda_.1} parent=0 // pred_region
    _
  $region5: #{_lambda_.1} parent=0 // pred_fallthru
    _
  %15 = vst [vmem:[#allocation2] sm:$0xf] 0.0
  %16 = vst [vmem:[#allocation2 + $0x4] sm:$0xf] 0.0
  %17 = vst [vmem:[#allocation2 + $0x8] sm:$0xf] 0.0
  %18 = vst [vmem:[#allocation2 + $0xc] sm:$0xf] 0.0
  %19 = vst [vmem:[#allocation2 + $0x10] sm:$0xf] 0.0
  %20 = vst [vmem:[#allocation2 + $0x14] sm:$0xf] 0.0
  %21 = vst [vmem:[#allocation2 + $0x18] sm:$0xf] 0.0
  %22 = vst [vmem:[#allocation2 + $0x1c] sm:$0xf] 0.0
  %23 = vst [vmem:[#allocation2 + $0x20] sm:$0xf] 0.0
  %24 = vst [vmem:[#allocation2 + $0x24] sm:$0xf] 0.0
  %25 = vst [vmem:[#allocation2 + $0x28] sm:$0xf] 0.0
  %26 = vst [vmem:[#allocation2 + $0x2c] sm:$0xf] 0.0
  %27 = vst [vmem:[#allocation2 + $0x30] sm:$0xf] 0.0
  %28 = vst [vmem:[#allocation2 + $0x34] sm:$0xf] 0.0
  %29 = vst [vmem:[#allocation2 + $0x38] sm:$0xf] 0.0
  %30 = vst [vmem:[#allocation2 + $0x3c] sm:$0xf] 0.0
  %31 = vst [vmem:[#allocation2 + $0x40] sm:$0xf] 0.0
  %32 = vst [vmem:[#allocation2 + $0x44] sm:$0xf] 0.0
  %33 = vst [vmem:[#allocation2 + $0x48] sm:$0xf] 0.0
  %34 = vst [vmem:[#allocation2 + $0x4c] sm:$0xf] 0.0
  %35 = vst [vmem:[#allocation2 + $0x50] sm:$0xf] 0.0
  %36 = vst [vmem:[#allocation2 + $0x54] sm:$0xf] 0.0
  %37 = vst [vmem:[#allocation2 + $0x58] sm:$0xf] 0.0
  %38 = vst [vmem:[#allocation2 + $0x5c] sm:$0xf] 0.0
  %39 = vst [vmem:[#allocation2 + $0x60] sm:$0xf] 0.0
  %40 = vst [vmem:[#allocation2 + $0x64] sm:$0xf] 0.0
  %41 = vst [vmem:[#allocation2 + $0x68] sm:$0xf] 0.0
  %42 = vst [vmem:[#allocation2 + $0x6c] sm:$0xf] 0.0
  %43 = vst [vmem:[#allocation2 + $0x70] sm:$0xf] 0.0
  %44 = vst [vmem:[#allocation2 + $0x74] sm:$0xf] 0.0
  %45 = vst [vmem:[#allocation2 + $0x78] sm:$0xf] 0.0
  %46 = vst [vmem:[#allocation2 + $0x7c] sm:$0xf] 0.0
  %v47 = vld [vmem:[%s1] sm:$0x1]
  %v48 = vld [vmem:[%s1 + $0x10] sm:$0x1]
  %v49 = vld [vmem:[%s1 + $0x20] sm:$0x1]
  %v50 = vld [vmem:[%s1 + $0x30] sm:$0x1]
  %v51 = vld [vmem:[%s1 + $0x40] sm:$0x1]
  %v52 = vld [vmem:[%s1 + $0x50] sm:$0x1]
  %v53 = vld [vmem:[%s1 + $0x60] sm:$0x1]
  %v54 = vld [vmem:[%s1 + $0x70] sm:$0x1]
  %v63 = vrot.slane %v48, 7
  %vm64 = vcmask 1041409
  %v65 = vsel %vm64, %v63, %v47
  %v66 = vrot.slane %v49, 6
  %vm67 = vcmask 1042434
  %v68 = vsel %vm67, %v66, %v65
  %v69 = vrot.slane %v50, 5
  %vm70 = vcmask 1043459
  %v71 = vsel %vm70, %v69, %v68
  %v72 = vrot.slane %v52, 7
  %v73 = vsel %vm64, %v72, %v51
  %v74 = vrot.slane %v53, 6
  %v75 = vsel %vm67, %v74, %v73
  %v76 = vrot.slane %v54, 5
  %v77 = vsel %vm70, %v76, %v75
  %78 = vrot.lane.b32.xlu0 %v71, 2
  %v79 = vpop.permute.xlu0 %78
  %80 = vrot.lane.b32.xlu0 %v77, 2
  %v81 = vpop.permute.xlu0 %80
  %s84 = scalar_lea.vmem [#allocation2], 8
  %vm85 = vcmask 125968
  %86 = vst.msk [vmem:[%s84] sm:$0xf] %vm85, %v79
  %87 = vst.msk [vmem:[%s84 + $0x4] sm:$0xf] %vm85, %v81
  %v88 = vld [vmem:[%s1 + $0x1] sm:$0x1]
  %v89 = vld [vmem:[%s1 + $0x11] sm:$0x1]
  %v90 = vld [vmem:[%s1 + $0x21] sm:$0x1]
  %v91 = vld [vmem:[%s1 + $0x31] sm:$0x1]
  %v92 = vld [vmem:[%s1 + $0x41] sm:$0x1]
  %v93 = vld [vmem:[%s1 + $0x51] sm:$0x1]
  %v94 = vld [vmem:[%s1 + $0x61] sm:$0x1]
  %v95 = vld [vmem:[%s1 + $0x71] sm:$0x1]
  %v104 = vrot.slane %v89, 7
  %v105 = vsel %vm64, %v104, %v88
  %v106 = vrot.slane %v90, 6
  %v107 = vsel %vm67, %v106, %v105
  %v108 = vrot.slane %v91, 5
  %v109 = vsel %vm70, %v108, %v107
  %v110 = vrot.slane %v93, 7
  %v111 = vsel %vm64, %v110, %v92
  %v112 = vrot.slane %v94, 6
  %v113 = vsel %vm67, %v112, %v111
  %v114 = vrot.slane %v95, 5
  %v115 = vsel %vm70, %v114, %v113
  %116 = vrot.lane.b32.xlu0 %v109, 2
  %v117 = vpop.permute.xlu0 %116
  %118 = vrot.lane.b32.xlu0 %v115, 2
  %v119 = vpop.permute.xlu0 %118
  %s122 = scalar_lea.vmem [#allocation2], 16
  %123 = vst.msk [vmem:[%s122] sm:$0xf] %vm85, %v117
  %124 = vst.msk [vmem:[%s122 + $0x4] sm:$0xf] %vm85, %v119
  %v125 = vld [vmem:[%s1 + $0x2] sm:$0x1]
  %v126 = vld [vmem:[%s1 + $0x12] sm:$0x1]
  %v127 = vld [vmem:[%s1 + $0x22] sm:$0x1]
  %v128 = vld [vmem:[%s1 + $0x32] sm:$0x1]
  %v129 = vld [vmem:[%s1 + $0x42] sm:$0x1]
  %v130 = vld [vmem:[%s1 + $0x52] sm:$0x1]
  %v131 = vld [vmem:[%s1 + $0x62] sm:$0x1]
  %v132 = vld [vmem:[%s1 + $0x72] sm:$0x1]
  %v141 = vrot.slane %v126, 7
  %v142 = vsel %vm64, %v141, %v125
  %v143 = vrot.slane %v127, 6
  %v144 = vsel %vm67, %v143, %v142
  %v145 = vrot.slane %v128, 5
  %v146 = vsel %vm70, %v145, %v144
  %v147 = vrot.slane %v130, 7
  %v148 = vsel %vm64, %v147, %v129
  %v149 = vrot.slane %v131, 6
  %v150 = vsel %vm67, %v149, %v148
  %v151 = vrot.slane %v132, 5
  %v152 = vsel %vm70, %v151, %v150
  %153 = vrot.lane.b32.xlu0 %v146, 2
  %v154 = vpop.permute.xlu0 %153
  %155 = vrot.lane.b32.xlu0 %v152, 2
  %v156 = vpop.permute.xlu0 %155
  %s159 = scalar_lea.vmem [#allocation2], 24
  %160 = vst.msk [vmem:[%s159] sm:$0xf] %vm85, %v154
  %161 = vst.msk [vmem:[%s159 + $0x4] sm:$0xf] %vm85, %v156
  %v162 = vld [vmem:[%s1 + $0x3] sm:$0x1]
  %v163 = vld [vmem:[%s1 + $0x13] sm:$0x1]
  %v164 = vld [vmem:[%s1 + $0x23] sm:$0x1]
  %v165 = vld [vmem:[%s1 + $0x33] sm:$0x1]
  %v166 = vld [vmem:[%s1 + $0x43] sm:$0x1]
  %v167 = vld [vmem:[%s1 + $0x53] sm:$0x1]
  %v168 = vld [vmem:[%s1 + $0x63] sm:$0x1]
  %v169 = vld [vmem:[%s1 + $0x73] sm:$0x1]
  %v178 = vrot.slane %v163, 7
  %v179 = vsel %vm64, %v178, %v162
  %v180 = vrot.slane %v164, 6
  %v181 = vsel %vm67, %v180, %v179
  %v182 = vrot.slane %v165, 5
  %v183 = vsel %vm70, %v182, %v181
  %v184 = vrot.slane %v167, 7
  %v185 = vsel %vm64, %v184, %v166
  %v186 = vrot.slane %v168, 6
  %v187 = vsel %vm67, %v186, %v185
  %v188 = vrot.slane %v169, 5
  %v189 = vsel %vm70, %v188, %v187
  %190 = vrot.lane.b32.xlu0 %v183, 2
  %v191 = vpop.permute.xlu0 %190
  %192 = vrot.lane.b32.xlu0 %v189, 2
  %v193 = vpop.permute.xlu0 %192
  %s196 = scalar_lea.vmem [#allocation2], 32
  %197 = vst.msk [vmem:[%s196] sm:$0xf] %vm85, %v191
  %198 = vst.msk [vmem:[%s196 + $0x4] sm:$0xf] %vm85, %v193
  %v199 = vld [vmem:[%s1 + $0x4] sm:$0x1]
  %v200 = vld [vmem:[%s1 + $0x14] sm:$0x1]
  %v201 = vld [vmem:[%s1 + $0x24] sm:$0x1]
  %v202 = vld [vmem:[%s1 + $0x34] sm:$0x1]
  %v203 = vld [vmem:[%s1 + $0x44] sm:$0x1]
  %v204 = vld [vmem:[%s1 + $0x54] sm:$0x1]
  %v205 = vld [vmem:[%s1 + $0x64] sm:$0x1]
  %v206 = vld [vmem:[%s1 + $0x74] sm:$0x1]
  %v215 = vrot.slane %v200, 7
  %v216 = vsel %vm64, %v215, %v199
  %v217 = vrot.slane %v201, 6
  %v218 = vsel %vm67, %v217, %v216
  %v219 = vrot.slane %v202, 5
  %v220 = vsel %vm70, %v219, %v218
  %v221 = vrot.slane %v204, 7
  %v222 = vsel %vm64, %v221, %v203
  %v223 = vrot.slane %v205, 6
  %v224 = vsel %vm67, %v223, %v222
  %v225 = vrot.slane %v206, 5
  %v226 = vsel %vm70, %v225, %v224
  %227 = vrot.lane.b32.xlu0 %v220, 2
  %v228 = vpop.permute.xlu0 %227
  %229 = vrot.lane.b32.xlu0 %v226, 2
  %v230 = vpop.permute.xlu0 %229
  %s233 = scalar_lea.vmem [#allocation2], 40
  %234 = vst.msk [vmem:[%s233] sm:$0xf] %vm85, %v228
  %235 = vst.msk [vmem:[%s233 + $0x4] sm:$0xf] %vm85, %v230
  %v236 = vld [vmem:[%s1 + $0x5] sm:$0x1]
  %v237 = vld [vmem:[%s1 + $0x15] sm:$0x1]
  %v238 = vld [vmem:[%s1 + $0x25] sm:$0x1]
  %v239 = vld [vmem:[%s1 + $0x35] sm:$0x1]
  %v240 = vld [vmem:[%s1 + $0x45] sm:$0x1]
  %v241 = vld [vmem:[%s1 + $0x55] sm:$0x1]
  %v242 = vld [vmem:[%s1 + $0x65] sm:$0x1]
  %v243 = vld [vmem:[%s1 + $0x75] sm:$0x1]
  %v252 = vrot.slane %v237, 7
  %v253 = vsel %vm64, %v252, %v236
  %v254 = vrot.slane %v238, 6
  %v255 = vsel %vm67, %v254, %v253
  %v256 = vrot.slane %v239, 5
  %v257 = vsel %vm70, %v256, %v255
  %v258 = vrot.slane %v241, 7
  %v259 = vsel %vm64, %v258, %v240
  %v260 = vrot.slane %v242, 6
  %v261 = vsel %vm67, %v260, %v259
  %v262 = vrot.slane %v243, 5
  %v263 = vsel %vm70, %v262, %v261
  %264 = vrot.lane.b32.xlu0 %v257, 2
  %v265 = vpop.permute.xlu0 %264
  %266 = vrot.lane.b32.xlu0 %v263, 2
  %v267 = vpop.permute.xlu0 %266
  %s270 = scalar_lea.vmem [#allocation2], 48
  %271 = vst.msk [vmem:[%s270] sm:$0xf] %vm85, %v265
  %272 = vst.msk [vmem:[%s270 + $0x4] sm:$0xf] %vm85, %v267
  %v273 = vld [vmem:[%s1 + $0x6] sm:$0x1]
  %v274 = vld [vmem:[%s1 + $0x16] sm:$0x1]
  %v275 = vld [vmem:[%s1 + $0x26] sm:$0x1]
  %v276 = vld [vmem:[%s1 + $0x36] sm:$0x1]
  %v277 = vld [vmem:[%s1 + $0x46] sm:$0x1]
  %v278 = vld [vmem:[%s1 + $0x56] sm:$0x1]
  %v279 = vld [vmem:[%s1 + $0x66] sm:$0x1]
  %v280 = vld [vmem:[%s1 + $0x76] sm:$0x1]
  %v289 = vrot.slane %v274, 7
  %v290 = vsel %vm64, %v289, %v273
  %v291 = vrot.slane %v275, 6
  %v292 = vsel %vm67, %v291, %v290
  %v293 = vrot.slane %v276, 5
  %v294 = vsel %vm70, %v293, %v292
  %v295 = vrot.slane %v278, 7
  %v296 = vsel %vm64, %v295, %v277
  %v297 = vrot.slane %v279, 6
  %v298 = vsel %vm67, %v297, %v296
  %v299 = vrot.slane %v280, 5
  %v300 = vsel %vm70, %v299, %v298
  %301 = vrot.lane.b32.xlu0 %v294, 2
  %v302 = vpop.permute.xlu0 %301
  %303 = vrot.lane.b32.xlu0 %v300, 2
  %v304 = vpop.permute.xlu0 %303
  %s307 = scalar_lea.vmem [#allocation2], 56
  %308 = vst.msk [vmem:[%s307] sm:$0xf] %vm85, %v302
  %309 = vst.msk [vmem:[%s307 + $0x4] sm:$0xf] %vm85, %v304
  %v310 = vld [vmem:[%s1 + $0x7] sm:$0x1]
  %v311 = vld [vmem:[%s1 + $0x17] sm:$0x1]
  %v312 = vld [vmem:[%s1 + $0x27] sm:$0x1]
  %v313 = vld [vmem:[%s1 + $0x37] sm:$0x1]
  %v314 = vld [vmem:[%s1 + $0x47] sm:$0x1]
  %v315 = vld [vmem:[%s1 + $0x57] sm:$0x1]
  %v316 = vld [vmem:[%s1 + $0x67] sm:$0x1]
  %v317 = vld [vmem:[%s1 + $0x77] sm:$0x1]
  %v326 = vrot.slane %v311, 7
  %v327 = vsel %vm64, %v326, %v310
  %v328 = vrot.slane %v312, 6
  %v329 = vsel %vm67, %v328, %v327
  %v330 = vrot.slane %v313, 5
  %v331 = vsel %vm70, %v330, %v329
  %v332 = vrot.slane %v315, 7
  %v333 = vsel %vm64, %v332, %v314
  %v334 = vrot.slane %v316, 6
  %v335 = vsel %vm67, %v334, %v333
  %v336 = vrot.slane %v317, 5
  %v337 = vsel %vm70, %v336, %v335
  %338 = vrot.lane.b32.xlu0 %v331, 2
  %v339 = vpop.permute.xlu0 %338
  %340 = vrot.lane.b32.xlu0 %v337, 2
  %v341 = vpop.permute.xlu0 %340
  %s344 = scalar_lea.vmem [#allocation2], 64
  %345 = vst.msk [vmem:[%s344] sm:$0xf] %vm85, %v339
  %346 = vst.msk [vmem:[%s344 + $0x4] sm:$0xf] %vm85, %v341
  %v347 = vld [vmem:[%s1 + $0x8] sm:$0x1]
  %v348 = vld [vmem:[%s1 + $0x18] sm:$0x1]
  %v349 = vld [vmem:[%s1 + $0x28] sm:$0x1]
  %v350 = vld [vmem:[%s1 + $0x38] sm:$0x1]
  %v351 = vld [vmem:[%s1 + $0x48] sm:$0x1]
  %v352 = vld [vmem:[%s1 + $0x58] sm:$0x1]
  %v353 = vld [vmem:[%s1 + $0x68] sm:$0x1]
  %v354 = vld [vmem:[%s1 + $0x78] sm:$0x1]
  %v363 = vrot.slane %v348, 7
  %v364 = vsel %vm64, %v363, %v347
  %v365 = vrot.slane %v349, 6
  %v366 = vsel %vm67, %v365, %v364
  %v367 = vrot.slane %v350, 5
  %v368 = vsel %vm70, %v367, %v366
  %v369 = vrot.slane %v352, 7
  %v370 = vsel %vm64, %v369, %v351
  %v371 = vrot.slane %v353, 6
  %v372 = vsel %vm67, %v371, %v370
  %v373 = vrot.slane %v354, 5
  %v374 = vsel %vm70, %v373, %v372
  %375 = vrot.lane.b32.xlu0 %v368, 2
  %v376 = vpop.permute.xlu0 %375
  %377 = vrot.lane.b32.xlu0 %v374, 2
  %v378 = vpop.permute.xlu0 %377
  %s381 = scalar_lea.vmem [#allocation2], 72
  %382 = vst.msk [vmem:[%s381] sm:$0xf] %vm85, %v376
  %383 = vst.msk [vmem:[%s381 + $0x4] sm:$0xf] %vm85, %v378
  %v384 = vld [vmem:[%s1 + $0x9] sm:$0x1]
  %v385 = vld [vmem:[%s1 + $0x19] sm:$0x1]
  %v386 = vld [vmem:[%s1 + $0x29] sm:$0x1]
  %v387 = vld [vmem:[%s1 + $0x39] sm:$0x1]
  %v388 = vld [vmem:[%s1 + $0x49] sm:$0x1]
  %v389 = vld [vmem:[%s1 + $0x59] sm:$0x1]
  %v390 = vld [vmem:[%s1 + $0x69] sm:$0x1]
  %v391 = vld [vmem:[%s1 + $0x79] sm:$0x1]
  %v400 = vrot.slane %v385, 7
  %v401 = vsel %vm64, %v400, %v384
  %v402 = vrot.slane %v386, 6
  %v403 = vsel %vm67, %v402, %v401
  %v404 = vrot.slane %v387, 5
  %v405 = vsel %vm70, %v404, %v403
  %v406 = vrot.slane %v389, 7
  %v407 = vsel %vm64, %v406, %v388
  %v408 = vrot.slane %v390, 6
  %v409 = vsel %vm67, %v408, %v407
  %v410 = vrot.slane %v391, 5
  %v411 = vsel %vm70, %v410, %v409
  %412 = vrot.lane.b32.xlu0 %v405, 2
  %v413 = vpop.permute.xlu0 %412
  %414 = vrot.lane.b32.xlu0 %v411, 2
  %v415 = vpop.permute.xlu0 %414
  %s418 = scalar_lea.vmem [#allocation2], 80
  %419 = vst.msk [vmem:[%s418] sm:$0xf] %vm85, %v413
  %420 = vst.msk [vmem:[%s418 + $0x4] sm:$0xf] %vm85, %v415
  %v421 = vld [vmem:[%s1 + $0xa] sm:$0x1]
  %v422 = vld [vmem:[%s1 + $0x1a] sm:$0x1]
  %v423 = vld [vmem:[%s1 + $0x2a] sm:$0x1]
  %v424 = vld [vmem:[%s1 + $0x3a] sm:$0x1]
  %v425 = vld [vmem:[%s1 + $0x4a] sm:$0x1]
  %v426 = vld [vmem:[%s1 + $0x5a] sm:$0x1]
  %v427 = vld [vmem:[%s1 + $0x6a] sm:$0x1]
  %v428 = vld [vmem:[%s1 + $0x7a] sm:$0x1]
  %v437 = vrot.slane %v422, 7
  %v438 = vsel %vm64, %v437, %v421
  %v439 = vrot.slane %v423, 6
  %v440 = vsel %vm67, %v439, %v438
  %v441 = vrot.slane %v424, 5
  %v442 = vsel %vm70, %v441, %v440
  %v443 = vrot.slane %v426, 7
  %v444 = vsel %vm64, %v443, %v425
  %v445 = vrot.slane %v427, 6
  %v446 = vsel %vm67, %v445, %v444
  %v447 = vrot.slane %v428, 5
  %v448 = vsel %vm70, %v447, %v446
  %449 = vrot.lane.b32.xlu0 %v442, 2
  %v450 = vpop.permute.xlu0 %449
  %451 = vrot.lane.b32.xlu0 %v448, 2
  %v452 = vpop.permute.xlu0 %451
  %s455 = scalar_lea.vmem [#allocation2], 88
  %456 = vst.msk [vmem:[%s455] sm:$0xf] %vm85, %v450
  %457 = vst.msk [vmem:[%s455 + $0x4] sm:$0xf] %vm85, %v452
  %v458 = vld [vmem:[%s1 + $0xb] sm:$0x1]
  %v459 = vld [vmem:[%s1 + $0x1b] sm:$0x1]
  %v460 = vld [vmem:[%s1 + $0x2b] sm:$0x1]
  %v461 = vld [vmem:[%s1 + $0x3b] sm:$0x1]
  %v462 = vld [vmem:[%s1 + $0x4b] sm:$0x1]
  %v463 = vld [vmem:[%s1 + $0x5b] sm:$0x1]
  %v464 = vld [vmem:[%s1 + $0x6b] sm:$0x1]
  %v465 = vld [vmem:[%s1 + $0x7b] sm:$0x1]
  %v474 = vrot.slane %v459, 7
  %v475 = vsel %vm64, %v474, %v458
  %v476 = vrot.slane %v460, 6
  %v477 = vsel %vm67, %v476, %v475
  %v478 = vrot.slane %v461, 5
  %v479 = vsel %vm70, %v478, %v477
  %v480 = vrot.slane %v463, 7
  %v481 = vsel %vm64, %v480, %v462
  %v482 = vrot.slane %v464, 6
  %v483 = vsel %vm67, %v482, %v481
  %v484 = vrot.slane %v465, 5
  %v485 = vsel %vm70, %v484, %v483
  %486 = vrot.lane.b32.xlu0 %v479, 2
  %v487 = vpop.permute.xlu0 %486
  %488 = vrot.lane.b32.xlu0 %v485, 2
  %v489 = vpop.permute.xlu0 %488
  %s492 = scalar_lea.vmem [#allocation2], 96
  %493 = vst.msk [vmem:[%s492] sm:$0xf] %vm85, %v487
  %494 = vst.msk [vmem:[%s492 + $0x4] sm:$0xf] %vm85, %v489
  %v495 = vld [vmem:[%s1 + $0xc] sm:$0x1]
  %v496 = vld [vmem:[%s1 + $0x1c] sm:$0x1]
  %v497 = vld [vmem:[%s1 + $0x2c] sm:$0x1]
  %v498 = vld [vmem:[%s1 + $0x3c] sm:$0x1]
  %v499 = vld [vmem:[%s1 + $0x4c] sm:$0x1]
  %v500 = vld [vmem:[%s1 + $0x5c] sm:$0x1]
  %v501 = vld [vmem:[%s1 + $0x6c] sm:$0x1]
  %v502 = vld [vmem:[%s1 + $0x7c] sm:$0x1]
  %v511 = vrot.slane %v496, 7
  %v512 = vsel %vm64, %v511, %v495
  %v513 = vrot.slane %v497, 6
  %v514 = vsel %vm67, %v513, %v512
  %v515 = vrot.slane %v498, 5
  %v516 = vsel %vm70, %v515, %v514
  %v517 = vrot.slane %v500, 7
  %v518 = vsel %vm64, %v517, %v499
  %v519 = vrot.slane %v501, 6
  %v520 = vsel %vm67, %v519, %v518
  %v521 = vrot.slane %v502, 5
  %v522 = vsel %vm70, %v521, %v520
  %523 = vrot.lane.b32.xlu0 %v516, 2
  %v524 = vpop.permute.xlu0 %523
  %525 = vrot.lane.b32.xlu0 %v522, 2
  %v526 = vpop.permute.xlu0 %525
  %s529 = scalar_lea.vmem [#allocation2], 104
  %530 = vst.msk [vmem:[%s529] sm:$0xf] %vm85, %v524
  %531 = vst.msk [vmem:[%s529 + $0x4] sm:$0xf] %vm85, %v526
  %v532 = vld [vmem:[%s1 + $0xd] sm:$0x1]
  %v533 = vld [vmem:[%s1 + $0x1d] sm:$0x1]
  %v534 = vld [vmem:[%s1 + $0x2d] sm:$0x1]
  %v535 = vld [vmem:[%s1 + $0x3d] sm:$0x1]
  %v536 = vld [vmem:[%s1 + $0x4d] sm:$0x1]
  %v537 = vld [vmem:[%s1 + $0x5d] sm:$0x1]
  %v538 = vld [vmem:[%s1 + $0x6d] sm:$0x1]
  %v539 = vld [vmem:[%s1 + $0x7d] sm:$0x1]
  %v548 = vrot.slane %v533, 7
  %v549 = vsel %vm64, %v548, %v532
  %v550 = vrot.slane %v534, 6
  %v551 = vsel %vm67, %v550, %v549
  %v552 = vrot.slane %v535, 5
  %v553 = vsel %vm70, %v552, %v551
  %v554 = vrot.slane %v537, 7
  %v555 = vsel %vm64, %v554, %v536
  %v556 = vrot.slane %v538, 6
  %v557 = vsel %vm67, %v556, %v555
  %v558 = vrot.slane %v539, 5
  %v559 = vsel %vm70, %v558, %v557
  %560 = vrot.lane.b32.xlu0 %v553, 2
  %v561 = vpop.permute.xlu0 %560
  %562 = vrot.lane.b32.xlu0 %v559, 2
  %v563 = vpop.permute.xlu0 %562
  %s566 = scalar_lea.vmem [#allocation2], 112
  %567 = vst.msk [vmem:[%s566] sm:$0xf] %vm85, %v561
  %568 = vst.msk [vmem:[%s566 + $0x4] sm:$0xf] %vm85, %v563
  %v569 = vld [vmem:[%s1 + $0xe] sm:$0x1]
  %v570 = vld [vmem:[%s1 + $0x1e] sm:$0x1]
  %v571 = vld [vmem:[%s1 + $0x2e] sm:$0x1]
  %v572 = vld [vmem:[%s1 + $0x3e] sm:$0x1]
  %v573 = vld [vmem:[%s1 + $0x4e] sm:$0x1]
  %v574 = vld [vmem:[%s1 + $0x5e] sm:$0x1]
  %v575 = vld [vmem:[%s1 + $0x6e] sm:$0x1]
  %v576 = vld [vmem:[%s1 + $0x7e] sm:$0x1]
  %v585 = vrot.slane %v570, 7
  %v586 = vsel %vm64, %v585, %v569
  %v587 = vrot.slane %v571, 6
  %v588 = vsel %vm67, %v587, %v586
  %v589 = vrot.slane %v572, 5
  %v590 = vsel %vm70, %v589, %v588
  %v591 = vrot.slane %v574, 7
  %v592 = vsel %vm64, %v591, %v573
  %v593 = vrot.slane %v575, 6
  %v594 = vsel %vm67, %v593, %v592
  %v595 = vrot.slane %v576, 5
  %v596 = vsel %vm70, %v595, %v594
  %597 = vrot.lane.b32.xlu0 %v590, 2
  %v598 = vpop.permute.xlu0 %597
  %599 = vrot.lane.b32.xlu0 %v596, 2
  %v600 = vpop.permute.xlu0 %599
  %s603 = scalar_lea.vmem [#allocation2], 120
  %604 = vst.msk [vmem:[%s603] sm:$0xf] %vm85, %v598
  %605 = vst.msk [vmem:[%s603 + $0x4] sm:$0xf] %vm85, %v600
  %s606 = sld [smem:[#allocation4]]
  %s607 = sld [smem:[#allocation4 + $0x1]]
  %s608 = smul.u32 %s606, 8
  %s609 = scalar_lea.vmem [#allocation2], %s608
  %v610 = vld [vmem:[%s609] sm:$0xf]
  %v611 = vld [vmem:[%s609 + $0x4] sm:$0xf]
  %v612 = vld [vmem:[%s609 + $0x8] sm:$0xf]
  %v613 = vld [vmem:[%s609 + $0xc] sm:$0xf]
  %v614 = vld [vmem:[%s609 + $0x10] sm:$0xf]
  %v615 = vld [vmem:[%s609 + $0x14] sm:$0xf]
  %v616 = vld [vmem:[%s609 + $0x18] sm:$0xf]
  %v617 = vld [vmem:[%s609 + $0x1c] sm:$0xf]
  %v618 = vld [vmem:[%s609 + $0x20] sm:$0xf]
  %v619 = vld [vmem:[%s609 + $0x24] sm:$0xf]
  %v620 = vld [vmem:[%s609 + $0x28] sm:$0xf]
  %v621 = vld [vmem:[%s609 + $0x2c] sm:$0xf]
  %v622 = vld [vmem:[%s609 + $0x30] sm:$0xf]
  %v623 = vld [vmem:[%s609 + $0x34] sm:$0xf]
  %v624 = vld [vmem:[%s609 + $0x38] sm:$0xf]
  %v625 = vld [vmem:[%s609 + $0x3c] sm:$0xf]
  %s626 = sand.u32 %s607, 127
  %s627 = sand.u32 %s626, 127
  %628 = vrot.lane.b32.xlu0 %v610, %s627
  %v629 = vpop.permute.xlu0 %628
  %630 = vrot.lane.b32.xlu0 %v611, %s627
  %v631 = vpop.permute.xlu0 %630
  %632 = vrot.lane.b32.xlu0 %v612, %s627
  %v633 = vpop.permute.xlu0 %632
  %634 = vrot.lane.b32.xlu0 %v613, %s627
  %v635 = vpop.permute.xlu0 %634
  %636 = vrot.lane.b32.xlu0 %v614, %s627
  %v637 = vpop.permute.xlu0 %636
  %638 = vrot.lane.b32.xlu0 %v615, %s627
  %v639 = vpop.permute.xlu0 %638
  %640 = vrot.lane.b32.xlu0 %v616, %s627
  %v641 = vpop.permute.xlu0 %640
  %642 = vrot.lane.b32.xlu0 %v617, %s627
  %v643 = vpop.permute.xlu0 %642
  %644 = vrot.lane.b32.xlu0 %v618, %s627
  %v645 = vpop.permute.xlu0 %644
  %646 = vrot.lane.b32.xlu0 %v619, %s627
  %v647 = vpop.permute.xlu0 %646
  %648 = vrot.lane.b32.xlu0 %v620, %s627
  %v649 = vpop.permute.xlu0 %648
  %650 = vrot.lane.b32.xlu0 %v621, %s627
  %v651 = vpop.permute.xlu0 %650
  %652 = vrot.lane.b32.xlu0 %v622, %s627
  %v653 = vpop.permute.xlu0 %652
  %654 = vrot.lane.b32.xlu0 %v623, %s627
  %v655 = vpop.permute.xlu0 %654
  %656 = vrot.lane.b32.xlu0 %v624, %s627
  %v657 = vpop.permute.xlu0 %656
  %658 = vrot.lane.b32.xlu0 %v625, %s627
  %v659 = vpop.permute.xlu0 %658
  %vm660 = vcmask 60416
  %661 = vst.msk [vmem:[%s2] sm:$0xf] %vm660, %v629
  %662 = vst.msk [vmem:[%s2 + $0x4] sm:$0xf] %vm660, %v631
  %663 = vst.msk [vmem:[%s2 + $0x8] sm:$0xf] %vm660, %v633
  %664 = vst.msk [vmem:[%s2 + $0xc] sm:$0xf] %vm660, %v635
  %665 = vst.msk [vmem:[%s2 + $0x10] sm:$0xf] %vm660, %v637
  %666 = vst.msk [vmem:[%s2 + $0x14] sm:$0xf] %vm660, %v639
  %667 = vst.msk [vmem:[%s2 + $0x18] sm:$0xf] %vm660, %v641
  %668 = vst.msk [vmem:[%s2 + $0x1c] sm:$0xf] %vm660, %v643
  %669 = vst.msk [vmem:[%s2 + $0x20] sm:$0xf] %vm660, %v645
  %670 = vst.msk [vmem:[%s2 + $0x24] sm:$0xf] %vm660, %v647
  %671 = vst.msk [vmem:[%s2 + $0x28] sm:$0xf] %vm660, %v649
  %672 = vst.msk [vmem:[%s2 + $0x2c] sm:$0xf] %vm660, %v651
  %673 = vst.msk [vmem:[%s2 + $0x30] sm:$0xf] %vm660, %v653
  %674 = vst.msk [vmem:[%s2 + $0x34] sm:$0xf] %vm660, %v655
  %675 = vst.msk [vmem:[%s2 + $0x38] sm:$0xf] %vm660, %v657
  %676 = vst.msk [vmem:[%s2 + $0x3c] sm:$0xf] %vm660, %v659
  // Predicated region
  $region6: #{_lambda_.1} parent=0 // pred_check
    _
  $region7: #{_lambda_.1} parent=0 // pred_check_branch
    %678 = sbr.rel (0) target = $region9
  $region8: #{_lambda_.1} parent=0 // pred_region
    _
  $region9: #{_lambda_.1} parent=0 // pred_fallthru
    _
  // Predicated region
  $region10: #{_lambda_.1} parent=0 // pred_check
    _
  $region11: #{_lambda_.1} parent=0 // pred_check_branch
    %680 = sbr.rel (0) target = $region13
  $region12: #{_lambda_.1} parent=0 // pred_region
    _
  $region13: #{_lambda_.1} parent=0 // pred_fallthru
    _

</llo_original>
